<compile_context>
chip_gen: v5e
topology: v5e:2x2
jax: 0.10.0
libtpu: 0.0.40
codegen_flags: <defaults>
</compile_context>

<pallas_src>
import jax
import jax.numpy as jnp
from jax.experimental import pallas as pl
from jax.experimental.pallas import tpu as pltpu

_LANE = 128
_SUBLANE = 8
_MAX_COLS = 2048  # widest lane-dense slab (multiple of 128)


def _target_block_bytes() -> int:
    """Generation-aware per-array, per-buffer VMEM block budget."""
    try:
        kind = jax.devices()[0].device_kind.lower()
    except Exception:  # pragma: no cover - be robust if device query fails
        kind = ""
    if "v5" in kind:
        # v5e: 16 MiB default scoped VMEM -> 2 arrays x 2 buffers x 3 MiB = 12 MiB.
        return 3 * 1024 * 1024
    # v6e (32 MiB scoped) and v7x (64 MiB physical, shared by 2 TCs):
    # 2 arrays x 2 buffers x 6 MiB = 24 MiB, under the default scoped limit.
    return 6 * 1024 * 1024


def _scale_kernel(scale_ref, x_ref, o_ref):
    # scale_ref: SMEM (1,) f32; x_ref: VMEM tile (input dtype); o_ref: VMEM tile
    # (promoted output dtype). Multiply in f32 so bf16 inputs follow the same
    # promotion as `x * scale` (and PyTorch), then cast once on store.
    x = x_ref[...].astype(jnp.float32)
    o_ref[...] = (x * scale_ref[0]).astype(o_ref.dtype)


def scale_forward(x: jax.Array, scale, *, min_pallas_bytes: int = 4 << 20,
                  donate_x: bool = False) -> jax.Array:
    """y = x * scale, where `scale` is a learnable scalar parameter (float32)."""
    scale = jnp.asarray(scale, dtype=jnp.float32).reshape(-1)
    s0 = scale[0]

    orig_shape = x.shape
    in_dtype = x.dtype
    out_dtype = jnp.result_type(in_dtype, jnp.float32)
    n = x.size
    in_item = jnp.dtype(in_dtype).itemsize
    out_item = jnp.dtype(out_dtype).itemsize

    pad = (-n) % _LANE
    # Bypass Pallas when:
    #   * the tensor is too small for launch/pipeline overhead to pay off,
    #   * the dtype is non-float (promotion handled by plain JAX),
    #   * n is not a multiple of 128 (a Pallas path would need pad + slice,
    #     ~3x the ideal 2n bytes of HBM traffic; XLA's fused multiply is
    #     already at roofline at exactly read-n + write-n bytes).
    if (n * in_item < min_pallas_bytes
            or not jnp.issubdtype(in_dtype, jnp.floating)
            or pad != 0):
        return x * s0

    # ---- Lane-dense 2-D view (rows, cols), cols a multiple of 128 ----
    flat = x.reshape(-1)
    cols = _LANE
    rows = n // _LANE
    while cols < _MAX_COLS and rows % 2 == 0:
        cols *= 2
        rows //= 2
    x2d = flat.reshape(rows, cols)

    # ---- Row tiling: big (8,128)-aligned blocks, even grid for dual-TC v7x ----
    max_item = max(in_item, out_item)
    target_rows = max(_SUBLANE, _target_block_bytes() // (cols * max_item))
    target_rows = max(_SUBLANE, (target_rows // _SUBLANE) * _SUBLANE)

    if rows <= target_rows:
        if rows >= 2 * _SUBLANE:
            # Split the single block into two so a dual-TensorCore chip (v7x)
            # shards the "parallel" grid axis evenly across both cores.
            half = -(-rows // 2)
            tr = -(-half // _SUBLANE) * _SUBLANE
        else:
            tr = rows  # single full-extent block (always legal)
    else:
        tr = target_rows
        # Prefer an even number of grid steps (balanced dual-TC sharding on
        # v7x); only shrink tr, so the VMEM budget is never exceeded.
        while tr > _SUBLANE and pl.cdiv(rows, tr) % 2 == 1:
            tr -= _SUBLANE
    grid = (pl.cdiv(rows, tr),)

    io_aliases = {}
    if donate_x and out_dtype == in_dtype:
        io_aliases = {1: 0}  # alias x2d (input index 1) with the output

    out2d = pl.pallas_call(
        _scale_kernel,
        out_shape=jax.ShapeDtypeStruct((rows, cols), out_dtype),
        grid_spec=pltpu.PrefetchScalarGridSpec(
            num_scalar_prefetch=0,
            grid=grid,
            in_specs=[
                pl.BlockSpec(memory_space=pltpu.SMEM),        # scale scalar
                pl.BlockSpec((tr, cols), lambda i: (i, 0)),   # x tile
            ],
            out_specs=pl.BlockSpec((tr, cols), lambda i: (i, 0)),
        ),
        compiler_params=pltpu.CompilerParams(
            dimension_semantics=("parallel",),
        ),
        cost_estimate=pl.CostEstimate(
            flops=n, transcendentals=0,
            bytes_accessed=n * (in_item + out_item)),
        input_output_aliases=io_aliases,
    )(scale[:1], x2d)

    return out2d.reshape(orig_shape)


if __name__ == "__main__":
    key = jax.random.PRNGKey(0)
    k1, k2, k3, k4 = jax.random.split(key, 4)

    # Learnable scalar parameter, matching nn.Parameter(torch.tensor(0.75)).
    scale_param = jnp.array([0.75], dtype=jnp.float32)

    # 1) Small NCHW f32 input forced through the Pallas path.
    x_small = jax.random.normal(k1, (2, 4, 16, 16), dtype=jnp.float32)
    y_small = jax.block_until_ready(
        scale_forward(x_small, scale_param, min_pallas_bytes=0))
    assert y_small.shape == x_small.shape and y_small.dtype == jnp.float32
    assert jnp.allclose(y_small, x_small * 0.75, atol=1e-6, rtol=1e-6)

    # 2) Element count not a multiple of 128 -> misaligned bypass (single
    #    fused XLA multiply; no pad/slice extra HBM traffic).
    x_odd = jax.random.normal(k2, (3, 5, 7, 11), dtype=jnp.float32)
    y_odd = jax.block_until_ready(
        scale_forward(x_odd, scale_param, min_pallas_bytes=0))
    assert jnp.allclose(y_odd, x_odd * 0.75, atol=1e-6, rtol=1e-6)

    # 3) bf16 input through the Pallas path: promoted to f32 output (same as
    #    the bypass path and PyTorch's bf16-tensor * f32-parameter promotion).
    x_bf16 = jax.random.normal(k3, (2, 4, 16, 16), dtype=jnp.bfloat16)
    y_bf16 = jax.block_until_ready(
        scale_forward(x_bf16, scale_param, min_pallas_bytes=0))
    assert y_bf16.dtype == jnp.float32
    assert jnp.allclose(y_bf16, x_bf16.astype(jnp.float32) * 0.75,
                        atol=1e-6, rtol=1e-6)

    # 4) Larger input on the default path: lane-dense (576, 2048) slab tiled
    #    into an even number of multi-MiB row blocks (dual-TC friendly).
    x_big = jax.random.normal(k4, (9, 128, 32, 32), dtype=jnp.float32)
    y_big = jax.block_until_ready(scale_forward(x_big, scale_param))
    assert y_big.shape == x_big.shape and y_big.dtype == jnp.float32
    assert jnp.allclose(y_big, x_big * 0.75, atol=1e-6, rtol=1e-6)

    print("KERNEL_OK")
</pallas_src>

<mosaic_0001>
module attributes {stable_mosaic.version = 11 : i64} {
  func.func @_scale_kernel(%arg0: i32, %arg1: memref<1xf32, #tpu.memory_space<smem>>, %arg2: memref<1x2048xf32, #tpu.memory_space<vmem>>, %arg3: memref<1x2048xf32, #tpu.memory_space<vmem>>) attributes {dimension_semantics = [#tpu.dimension_semantics<parallel>], iteration_bounds = array<i64: 1>, scalar_prefetch = 0 : i64, scratch_operands = 0 : i64, tpu.core_type = #tpu.core_type<tc>, window_params = [{transform_indices = @transform_0, window_bounds = array<i64: 1>}, {transform_indices = @transform_1, window_bounds = array<i64: 1, 2048>}, {transform_indices = @transform_2, window_bounds = array<i64: 1, 2048>}]} {
    %c0 = arith.constant 0 : index
    %c0_0 = arith.constant 0 : index
    %0 = vector.load %arg2[%c0, %c0_0] : memref<1x2048xf32, #tpu.memory_space<vmem>>, vector<1x2048xf32>
    %c0_1 = arith.constant 0 : index
    %1 = memref.load %arg1[%c0_1] : memref<1xf32, #tpu.memory_space<smem>>
    %2 = vector.broadcast %1 : f32 to vector<1x2048xf32>
    %3 = arith.mulf %0, %2 : vector<1x2048xf32>
    %c0_2 = arith.constant 0 : index
    %c0_3 = arith.constant 0 : index
    %4 = vector.load %arg3[%c0_2, %c0_3] : memref<1x2048xf32, #tpu.memory_space<vmem>>, vector<1x2048xf32>
    tpu.vector_store %arg3[%c0_2, %c0_3], %3 {strides = array<i32>} : memref<1x2048xf32, #tpu.memory_space<vmem>>, vector<1x2048xf32>,
    return
  }
  func.func @transform_0(%arg0: i32) -> i32 {
    %c0_i32 = arith.constant 0 : i32
    %c0_i32_0 = arith.constant 0 : i32
    return %c0_i32 : i32
  }
  func.func @transform_1(%arg0: i32) -> (i32, i32) {
    %c0_i32 = arith.constant 0 : i32
    %c0_i32_0 = arith.constant 0 : i32
    return %arg0, %c0_i32 : i32, i32
  }
  func.func @transform_2(%arg0: i32) -> (i32, i32) {
    %c0_i32 = arith.constant 0 : i32
    %c0_i32_0 = arith.constant 0 : i32
    return %arg0, %c0_i32 : i32, i32
  }
}

</mosaic_0001>

<llo_original>
// kernel: tpu_custom_call.1
$region0: #{tpu_custom_call.1}
  #allocation0 [shape = 'u32[]', space=smem, size = 0x4, offset = 0x4, fixed_abs, tag = 'smem constant byte address 0x4 - core index']
  #allocation1 [shape = 'u32[72,128]{1,0:T(1,128)}', space=vmem, size = 0x9000, scoped, tag = 'internal scratch']
  #allocation2 [shape = 'f32[1]{0:T(128)S(6)}', space=smem, size = 0x200, scoped, tag = 'scoped memory for tpu_custom_call.1']
  %s0 = inlined_call_operand.<no memory space> [shape: f32[1], index: 0, kind: input, shape index: {}]
  %s1 = inlined_call_operand.hbm [shape: f32[1,2048], index: 1, kind: input, shape index: {}]
  %s2 = inlined_call_operand.hbm [shape: f32[1,2048], index: 2, kind: output, shape index: {}]
  %s3 = sld [smem:[#allocation0]]
  $region22: #{tpu_custom_call.1} parent=0
    _
  %s5 = ssub.s32 1, %s3
  %s6 = scalar_select 0, %s5, %s3
  %7 = sst [smem:[#allocation2]] %s0
  $region1: #{tpu_custom_call.1} parent=0
    #allocation3 [shape = 'u8[8192]{0}', space=vmem, size = 0x2000, scoped, tag = 'input window, operand 1, single buffered']
    #allocation4 [shape = 's32[1]{0}', space=sflag, size = 0x4, scoped, tag = 'scoped memory for tpu_custom_call.1']
    #allocation5 [shape = 's32[1]{0}', space=sflag, size = 0x4, scoped, tag = 'scoped memory for tpu_custom_call.1']
    #allocation6 [shape = 'u8[8192]{0}', space=vmem, size = 0x2000, scoped, tag = 'output window, operand 0, single buffered']
    %8 = vsyncpa [#allocation4], 0
    %9 = vsyncpa [#allocation5], 0
    // Predicated region
    $region2: #{tpu_custom_call.1} parent=1 // pred_check
      _
    $region3: #{tpu_custom_call.1} parent=1 // pred_check_branch
      %11 = sbr.rel (0) target = $region5
    $region4: #{tpu_custom_call.1} parent=1 // pred_region
      _
    $region5: #{tpu_custom_call.1} parent=1 // pred_fallthru
      _
    // Predicated region
    $region6: #{tpu_custom_call.1} parent=1 // pred_check
      _
    $region7: #{tpu_custom_call.1} parent=1 // pred_check_branch
      %13 = sbr.rel (0) target = $region9
    $region8: #{tpu_custom_call.1} parent=1 // pred_region
      %15 = vsyncadd [#allocation4], 0
      %s17 = sshll.u32 %s1, 4
      %s18 = int_to_ptr.hbm [resolvable:$true] %s17
      %s19 = sshll.u32 [#allocation3], 4
      %s20 = int_to_ptr.vmem [resolvable:$true] %s19
      %22 = dma.hbm_to_vmem [thread:$0]  %s18, 256, %s20, [#allocation4]
    $region9: #{tpu_custom_call.1} parent=1 // pred_fallthru
      _
    // Predicated region
    $region10: #{tpu_custom_call.1} parent=1 // pred_check
      _
    $region11: #{tpu_custom_call.1} parent=1 // pred_check_branch
      %24 = sbr.rel (0) target = $region13
    $region12: #{tpu_custom_call.1} parent=1 // pred_region
      %26 = dma.done [#allocation4], 256
    $region13: #{tpu_custom_call.1} parent=1 // pred_fallthru
      _
    %v27 = vld [vmem:[#allocation3] sm:$0xff]
    %v28 = vld [vmem:[#allocation3 + $0x8] sm:$0xff]
    %s29 = sld [smem:[#allocation2]]
    %v30 = vstv %s29
    %v31 = vmul.f32 %v27, %v30
    %v32 = vmul.f32 %v28, %v30
    %33 = vst [vmem:[#allocation6] sm:$0xff] %v31
    %34 = vst [vmem:[#allocation6 + $0x8] sm:$0xff] %v32
    // Predicated region
    $region14: #{tpu_custom_call.1} parent=1 // pred_check
      _
    $region15: #{tpu_custom_call.1} parent=1 // pred_check_branch
      %36 = sbr.rel (0) target = $region17
    $region16: #{tpu_custom_call.1} parent=1 // pred_region
      %38 = vsyncadd [#allocation5], 0
      %s40 = sshll.u32 [#allocation6], 4
      %s41 = int_to_ptr.vmem [resolvable:$true] %s40
      %s42 = sshll.u32 %s2, 4
      %s43 = int_to_ptr.hbm [resolvable:$true] %s42
      %45 = dma.vmem_to_hbm [thread:$0]  %s41, 256, %s43, [#allocation5]
    $region17: #{tpu_custom_call.1} parent=1 // pred_fallthru
      _
    // Predicated region
    $region18: #{tpu_custom_call.1} parent=1 // pred_check
      _
    $region19: #{tpu_custom_call.1} parent=1 // pred_check_branch
      %47 = sbr.rel (0) target = $region21
    $region20: #{tpu_custom_call.1} parent=1 // pred_region
      %49 = dma.done [#allocation5], 256
    $region21: #{tpu_custom_call.1} parent=1 // pred_fallthru
      _
    %50 = vsyncpa [#allocation4], 1
    %51 = vsyncpa [#allocation5], 1

</llo_original>
